<compile_context>
chip_gen: v5e
topology: v5e:2x2
jax: 0.10.0
libtpu: 0.0.40
codegen_flags: <defaults>
</compile_context>

<pallas_src>
import difflib

import jax
import jax.numpy as jnp
from jax.experimental import pallas as pl
from jax.experimental.pallas import tpu as pltpu


LOSS_LANES = 128  # lane-dense loss row: lane 0 = score loss, lane 1 = task loss


def _seal_kernel(x_ref, y_ref, w1f_ref, b1f_ref, w2p_ref, b2_ref, wep_ref,
                 yhat_ref, loss_ref):
    x = x_ref[...]                      # (B, D) f32
    y = y_ref[...]                      # (B, L) f32 (binary labels)

    # ---- fused first layer: [h | feat] = relu(x @ [W1 | Wf] + [b1 | bf]) ----
    # bf16 MXU operands, f32 accumulation; bias add + relu in f32.
    hf = jnp.dot(x.astype(jnp.bfloat16), w1f_ref[...],
                 preferred_element_type=jnp.float32) + b1f_ref[...]     # (B, 2H)
    hf = jnp.maximum(hf, 0.0)
    hf_bf = hf.astype(jnp.bfloat16)

    # ---- second layer, zero-padded weights so no lane slicing is needed ----
    # w2p = [[W2],[0]]  -> hf @ w2p == h @ W2        (exact)
    # wep = [[0],[We]]  -> hf @ wep == feat @ We     (exact)
    logits = jnp.dot(hf_bf, w2p_ref[...],
                     preferred_element_type=jnp.float32) + b2_ref[...]  # (B, L)
    scores = jnp.dot(hf_bf, wep_ref[...],
                     preferred_element_type=jnp.float32)                # (B, L)

    # ---- inference_module outputs (used under torch.no_grad in score mode) ----
    y_hat = jax.nn.sigmoid(logits)                                      # (B, L)
    yhat_ref[...] = y_hat

    # task loss: mean binary cross-entropy with logits (all f32 elementwise)
    bce = (jnp.maximum(logits, 0.0) - logits * y
           + jnp.log1p(jnp.exp(-jnp.abs(logits))))                      # (B, L)
    task_loss = jnp.mean(bce, keepdims=True)                            # (1, 1)

    # score loss: mean_b <scores, y_hat - y>  (== <scores,y_hat> - <scores,y>)
    score_loss = jnp.mean(
        jnp.sum(scores * (y_hat - y), axis=-1, keepdims=True),
        keepdims=True)                                                  # (1, 1)

    # Pack both scalars into one lane-dense 128-wide row (unmasked store).
    lane = jax.lax.broadcasted_iota(jnp.int32, loss_ref.shape, 1)
    loss_ref[...] = jnp.where(lane == 0, score_loss,
                              jnp.where(lane == 1, task_loss, 0.0))


def pack_params(params):
    """Host-side (XLA) packing: fuse first-layer weights, zero-pad second layer."""
    H = params["w1"].shape[1]
    L = params["w2"].shape[1]
    w1f = jnp.concatenate([params["w1"], params["wf"]], axis=1)   # (D, 2H)
    b1f = jnp.concatenate([params["b1"], params["bf"]], axis=1)   # (1, 2H)
    zero_hl = jnp.zeros((H, L), jnp.float32)
    w2p = jnp.concatenate([params["w2"], zero_hl], axis=0)        # (2H, L)
    wep = jnp.concatenate([zero_hl, params["we"]], axis=0)        # (2H, L)
    return {
        "w1f": w1f.astype(jnp.bfloat16),   # bf16 MXU operands (halves weight DMA)
        "b1f": b1f,                        # biases stay f32
        "w2p": w2p.astype(jnp.bfloat16),
        "b2": params["b2"],
        "wep": wep.astype(jnp.bfloat16),
    }


def seal_pallas_call(x, y, packed):
    B, _ = x.shape
    L = y.shape[-1]

    vmem = lambda: pl.BlockSpec(memory_space=pltpu.MemorySpace.VMEM)

    y_hat, losses = pl.pallas_call(
        _seal_kernel,
        out_shape=(
            jax.ShapeDtypeStruct((B, L), jnp.float32),           # y_hat
            jax.ShapeDtypeStruct((1, LOSS_LANES), jnp.float32),  # packed losses
        ),
        in_specs=[vmem() for _ in range(7)],
        out_specs=(vmem(), vmem()),
    )(x, y, packed["w1f"], packed["b1f"], packed["w2p"], packed["b2"],
      packed["wep"])
    return y_hat, losses


def seal_forward(x, y, params, mode="score"):
    """Mirrors SEAL.forward(x, y, mode)."""
    result = {}
    mode = difflib.get_close_matches(mode, ["task", "score"])[0]

    # loss_fn receives y.unsqueeze(1) in the PyTorch code; the energy loss is
    # per-example so the singleton dim is squeezed before entering the kernel.
    y3 = y[:, None, :]
    y2 = y3[:, 0, :]

    packed = pack_params(params)
    y_hat, losses = seal_pallas_call(x, y2, packed)

    if mode == "task":
        result["y_pred"] = y_hat
        result["loss"] = losses[0, 1]   # task loss
        return result
    # mode == "score"  (forward of inference_module is "no grad": values only)
    result["y_hat"] = y_hat
    result["loss"] = losses[0, 0]       # score loss
    return result


def init_params(key, D, H, L):
    k1, k2, k3, k4 = jax.random.split(key, 4)
    scale = 0.1
    return {
        "w1": scale * jax.random.normal(k1, (D, H), jnp.float32),
        "b1": jnp.zeros((1, H), jnp.float32),
        "w2": scale * jax.random.normal(k2, (H, L), jnp.float32),
        "b2": jnp.zeros((1, L), jnp.float32),
        "wf": scale * jax.random.normal(k3, (D, H), jnp.float32),
        "bf": jnp.zeros((1, H), jnp.float32),
        "we": scale * jax.random.normal(k4, (H, L), jnp.float32),
    }


if __name__ == "__main__":
    B, D, H, L = 8, 32, 32, 16

    key = jax.random.PRNGKey(0)
    kx, ky, kp = jax.random.split(key, 3)

    x = jax.random.normal(kx, (B, D), jnp.float32)
    y = (jax.random.uniform(ky, (B, L)) > 0.5).astype(jnp.float32)
    params = init_params(kp, D, H, L)

    out_score = seal_forward(x, y, params, mode="score")
    out_task = seal_forward(x, y, params, mode="task")

    jax.block_until_ready(out_score["y_hat"])
    jax.block_until_ready(out_score["loss"])
    jax.block_until_ready(out_task["y_pred"])
    jax.block_until_ready(out_task["loss"])

    assert out_score["y_hat"].shape == (B, L)
    assert out_score["loss"].shape == ()
    assert out_task["y_pred"].shape == (B, L)
    assert out_task["loss"].shape == ()
    assert bool(jnp.isfinite(out_score["loss"]))
    assert bool(jnp.isfinite(out_task["loss"]))

    print("KERNEL_OK")
</pallas_src>

<mosaic_0001>
module attributes {stable_mosaic.version = 11 : i64} {
  func.func @_seal_kernel(%arg0: memref<8x32xf32, #tpu.memory_space<vmem>>, %arg1: memref<8x16xf32, #tpu.memory_space<vmem>>, %arg2: memref<32x64xbf16, #tpu.memory_space<vmem>>, %arg3: memref<1x64xf32, #tpu.memory_space<vmem>>, %arg4: memref<64x16xbf16, #tpu.memory_space<vmem>>, %arg5: memref<1x16xf32, #tpu.memory_space<vmem>>, %arg6: memref<64x16xbf16, #tpu.memory_space<vmem>>, %arg7: memref<8x16xf32, #tpu.memory_space<vmem>>, %arg8: memref<1x128xf32, #tpu.memory_space<vmem>>) attributes {dimension_semantics = [], scalar_prefetch = 0 : i64, scratch_operands = 0 : i64, tpu.core_type = #tpu.core_type<tc>} {
    %c0 = arith.constant 0 : index
    %c0_0 = arith.constant 0 : index
    %0 = vector.load %arg0[%c0, %c0_0] : memref<8x32xf32, #tpu.memory_space<vmem>>, vector<8x32xf32>
    %c0_1 = arith.constant 0 : index
    %c0_2 = arith.constant 0 : index
    %1 = vector.load %arg1[%c0_1, %c0_2] : memref<8x16xf32, #tpu.memory_space<vmem>>, vector<8x16xf32>
    %2 = arith.truncf %0 : vector<8x32xf32> to vector<8x32xbf16>
    %c0_3 = arith.constant 0 : index
    %c0_4 = arith.constant 0 : index
    %3 = vector.load %arg2[%c0_3, %c0_4] : memref<32x64xbf16, #tpu.memory_space<vmem>>, vector<32x64xbf16>
    %cst = arith.constant dense<0.000000e+00> : vector<8x64xf32>
    %4 = tpu.matmul %2, %3, %cst {dimension_numbers = #tpu.dot_dimension_numbers<[1], [0], [0], [1], [0, 0, 1, 1], [], []>} : vector<8x32xbf16>, vector<32x64xbf16>, vector<8x64xf32> -> vector<8x64xf32>
    %c0_5 = arith.constant 0 : index
    %c0_6 = arith.constant 0 : index
    %5 = vector.load %arg3[%c0_5, %c0_6] : memref<1x64xf32, #tpu.memory_space<vmem>>, vector<1x64xf32>
    %6 = vector.broadcast %5 : vector<1x64xf32> to vector<8x64xf32>
    %7 = arith.addf %4, %6 : vector<8x64xf32>
    %cst_7 = arith.constant 0.000000e+00 : f32
    %8 = vector.broadcast %cst_7 : f32 to vector<8x64xf32>
    %9 = arith.maximumf %7, %8 : vector<8x64xf32>
    %10 = arith.truncf %9 : vector<8x64xf32> to vector<8x64xbf16>
    %c0_8 = arith.constant 0 : index
    %c0_9 = arith.constant 0 : index
    %11 = vector.load %arg4[%c0_8, %c0_9] : memref<64x16xbf16, #tpu.memory_space<vmem>>, vector<64x16xbf16>
    %cst_10 = arith.constant dense<0.000000e+00> : vector<8x16xf32>
    %12 = tpu.matmul %10, %11, %cst_10 {dimension_numbers = #tpu.dot_dimension_numbers<[1], [0], [0], [1], [0, 0, 1, 1], [], []>} : vector<8x64xbf16>, vector<64x16xbf16>, vector<8x16xf32> -> vector<8x16xf32>
    %c0_11 = arith.constant 0 : index
    %c0_12 = arith.constant 0 : index
    %13 = vector.load %arg5[%c0_11, %c0_12] : memref<1x16xf32, #tpu.memory_space<vmem>>, vector<1x16xf32>
    %14 = vector.broadcast %13 : vector<1x16xf32> to vector<8x16xf32>
    %15 = arith.addf %12, %14 : vector<8x16xf32>
    %c0_13 = arith.constant 0 : index
    %c0_14 = arith.constant 0 : index
    %16 = vector.load %arg6[%c0_13, %c0_14] : memref<64x16xbf16, #tpu.memory_space<vmem>>, vector<64x16xbf16>
    %cst_15 = arith.constant dense<0.000000e+00> : vector<8x16xf32>
    %17 = tpu.matmul %10, %16, %cst_15 {dimension_numbers = #tpu.dot_dimension_numbers<[1], [0], [0], [1], [0, 0, 1, 1], [], []>} : vector<8x64xbf16>, vector<64x16xbf16>, vector<8x16xf32> -> vector<8x16xf32>
    %18 = arith.negf %15 : vector<8x16xf32>
    %19 = math.exp %18 : vector<8x16xf32>
    %cst_16 = arith.constant 1.000000e+00 : f32
    %20 = vector.broadcast %cst_16 : f32 to vector<8x16xf32>
    %21 = arith.addf %20, %19 : vector<8x16xf32>
    %22 = arith.divf %20, %21 : vector<8x16xf32>
    %c0_17 = arith.constant 0 : index
    %c0_18 = arith.constant 0 : index
    %23 = vector.load %arg7[%c0_17, %c0_18] : memref<8x16xf32, #tpu.memory_space<vmem>>, vector<8x16xf32>
    tpu.vector_store %arg7[%c0_17, %c0_18], %22 {strides = array<i32>} : memref<8x16xf32, #tpu.memory_space<vmem>>, vector<8x16xf32>,
    %cst_19 = arith.constant 0.000000e+00 : f32
    %24 = vector.broadcast %cst_19 : f32 to vector<8x16xf32>
    %25 = arith.maximumf %15, %24 : vector<8x16xf32>
    %26 = arith.mulf %15, %1 : vector<8x16xf32>
    %27 = arith.subf %25, %26 : vector<8x16xf32>
    %28 = math.absf %15 : vector<8x16xf32>
    %cst_20 = arith.constant 0.000000e+00 : f32
    %29 = vector.broadcast %cst_20 : f32 to vector<8x16xf32>
    %30 = arith.subf %29, %28 : vector<8x16xf32>
    %31 = math.exp %30 : vector<8x16xf32>
    %32 = math.log1p %31 : vector<8x16xf32>
    %33 = arith.addf %27, %32 : vector<8x16xf32>
    %34 = vector.shape_cast %33 : vector<8x16xf32> to vector<1x8x16xf32>
    %cst_21 = arith.constant dense<0.000000e+00> : vector<1xf32>
    %35 = vector.multi_reduction <add>, %34, %cst_21 [1, 2] : vector<1x8x16xf32> to vector<1xf32>
    %36 = vector.shape_cast %35 : vector<1xf32> to vector<1x1x1xf32>
    %37 = vector.extract %36[0, 0, 0] : f32 from vector<1x1x1xf32>
    %38 = vector.broadcast %37 : f32 to vector<1x1xf32>
    %cst_22 = arith.constant 1.280000e+02 : f32
    %39 = vector.broadcast %cst_22 : f32 to vector<1x1xf32>
    %40 = arith.divf %38, %39 : vector<1x1xf32>
    %41 = arith.subf %22, %1 : vector<8x16xf32>
    %42 = arith.mulf %17, %41 : vector<8x16xf32>
    %cst_23 = arith.constant dense<0.000000e+00> : vector<8xf32>
    %43 = vector.multi_reduction <add>, %42, %cst_23 [1] : vector<8x16xf32> to vector<8xf32>
    %44 = vector.shape_cast %43 : vector<8xf32> to vector<8x1xf32>
    %45 = vector.shape_cast %44 : vector<8x1xf32> to vector<1x8x1xf32>
    %cst_24 = arith.constant dense<0.000000e+00> : vector<1xf32>
    %46 = vector.multi_reduction <add>, %45, %cst_24 [1, 2] : vector<1x8x1xf32> to vector<1xf32>
    %47 = vector.shape_cast %46 : vector<1xf32> to vector<1x1x1xf32>
    %48 = vector.extract %47[0, 0, 0] : f32 from vector<1x1x1xf32>
    %49 = vector.broadcast %48 : f32 to vector<1x1xf32>
    %cst_25 = arith.constant 8.000000e+00 : f32
    %50 = vector.broadcast %cst_25 : f32 to vector<1x1xf32>
    %51 = arith.divf %49, %50 : vector<1x1xf32>
    %52 = tpu.iota {dimensions = array<i32: 1>} : vector<1x128xi32>
    %c0_i32 = arith.constant 0 : i32
    %53 = vector.broadcast %c0_i32 : i32 to vector<1x128xi32>
    %54 = arith.cmpi eq, %52, %53 : vector<1x128xi32>
    %c1_i32 = arith.constant 1 : i32
    %55 = vector.broadcast %c1_i32 : i32 to vector<1x128xi32>
    %56 = arith.cmpi eq, %52, %55 : vector<1x128xi32>
    %cst_26 = arith.constant 0.000000e+00 : f32
    %57 = vector.shape_cast %40 : vector<1x1xf32> to vector<1x1xf32>
    %58 = vector.broadcast %57 : vector<1x1xf32> to vector<1x128xf32>
    %59 = vector.broadcast %cst_26 : f32 to vector<1x128xf32>
    %60 = arith.select %56, %58, %59 : vector<1x128xi1>, vector<1x128xf32>
    %61 = vector.shape_cast %51 : vector<1x1xf32> to vector<1x1xf32>
    %62 = vector.broadcast %61 : vector<1x1xf32> to vector<1x128xf32>
    %63 = arith.select %54, %62, %60 : vector<1x128xi1>, vector<1x128xf32>
    %c0_27 = arith.constant 0 : index
    %c0_28 = arith.constant 0 : index
    %64 = vector.load %arg8[%c0_27, %c0_28] : memref<1x128xf32, #tpu.memory_space<vmem>>, vector<1x128xf32>
    tpu.vector_store %arg8[%c0_27, %c0_28], %63 {strides = array<i32>} : memref<1x128xf32, #tpu.memory_space<vmem>>, vector<1x128xf32>,
    return
  }
}

</mosaic_0001>

<llo_original>
// kernel: tpu_custom_call.1
$region0: #{tpu_custom_call.1}
  #allocation0 [shape = 'u32[]', space=smem, size = 0x4, offset = 0x4, fixed_abs, tag = 'smem constant byte address 0x4 - core index']
  #allocation1 [shape = 'u32[72,128]{1,0:T(1,128)}', space=vmem, size = 0x9000, scoped, tag = 'internal scratch']
  %s0 = inlined_call_operand.vmem [shape: f32[8,32], index: 0, kind: input, shape index: {}]
  %s1 = inlined_call_operand.vmem [shape: f32[8,16], index: 1, kind: input, shape index: {}]
  %s2 = inlined_call_operand.vmem [shape: bf16[32,64], index: 2, kind: input, shape index: {}]
  %s3 = inlined_call_operand.vmem [shape: f32[1,64], index: 3, kind: input, shape index: {}]
  %s4 = inlined_call_operand.vmem [shape: bf16[64,16], index: 4, kind: input, shape index: {}]
  %s5 = inlined_call_operand.vmem [shape: f32[1,16], index: 5, kind: input, shape index: {}]
  %s6 = inlined_call_operand.vmem [shape: bf16[64,16], index: 6, kind: input, shape index: {}]
  %s7 = inlined_call_operand.hbm [shape: f32[8,16], index: 7, kind: output, shape index: {0}]
  %s8 = inlined_call_operand.hbm [shape: f32[1,128], index: 8, kind: output, shape index: {1}]
  %9 = xla_tuple %s7, %s8
  %s10 = sld [smem:[#allocation0]]
  $region46: #{tpu_custom_call.1} parent=0
    _
  %s12 = ssub.s32 1, %s10
  %s13 = scalar_select 0, %s12, %s10
  $region1: #{tpu_custom_call.1} parent=0
    #allocation2 [shape = 'u8[4096]{0}', space=vmem, size = 0x1000, scoped, tag = 'output window, operand 0, single buffered']
    #allocation3 [shape = 's32[1]{0}', space=sflag, size = 0x4, scoped, tag = 'scoped memory for tpu_custom_call.1']
    #allocation4 [shape = 'u8[512]{0}', space=vmem, size = 0x400, scoped, tag = 'output window, operand 1, single buffered']
    #allocation5 [shape = 's32[1]{0}', space=sflag, size = 0x4, scoped, tag = 'scoped memory for tpu_custom_call.1']
    %14 = vsyncpa [#allocation3], 0
    %15 = vsyncpa [#allocation5], 0
    // Predicated region
    $region2: #{tpu_custom_call.1} parent=1 // pred_check
      _
    $region3: #{tpu_custom_call.1} parent=1 // pred_check_branch
      %17 = sbr.rel (0) target = $region5
    $region4: #{tpu_custom_call.1} parent=1 // pred_region
      _
    $region5: #{tpu_custom_call.1} parent=1 // pred_fallthru
      _
    // Predicated region
    $region6: #{tpu_custom_call.1} parent=1 // pred_check
      _
    $region7: #{tpu_custom_call.1} parent=1 // pred_check_branch
      %19 = sbr.rel (0) target = $region9
    $region8: #{tpu_custom_call.1} parent=1 // pred_region
      _
    $region9: #{tpu_custom_call.1} parent=1 // pred_fallthru
      _
    // Predicated region
    $region10: #{tpu_custom_call.1} parent=1 // pred_check
      _
    $region11: #{tpu_custom_call.1} parent=1 // pred_check_branch
      %21 = sbr.rel (0) target = $region13
    $region12: #{tpu_custom_call.1} parent=1 // pred_region
      _
    $region13: #{tpu_custom_call.1} parent=1 // pred_fallthru
      _
    // Predicated region
    $region14: #{tpu_custom_call.1} parent=1 // pred_check
      _
    $region15: #{tpu_custom_call.1} parent=1 // pred_check_branch
      %23 = sbr.rel (0) target = $region17
    $region16: #{tpu_custom_call.1} parent=1 // pred_region
      _
    $region17: #{tpu_custom_call.1} parent=1 // pred_fallthru
      _
    // Predicated region
    $region18: #{tpu_custom_call.1} parent=1 // pred_check
      _
    $region19: #{tpu_custom_call.1} parent=1 // pred_check_branch
      %25 = sbr.rel (0) target = $region21
    $region20: #{tpu_custom_call.1} parent=1 // pred_region
      _
    $region21: #{tpu_custom_call.1} parent=1 // pred_fallthru
      _
    // Predicated region
    $region22: #{tpu_custom_call.1} parent=1 // pred_check
      _
    $region23: #{tpu_custom_call.1} parent=1 // pred_check_branch
      %27 = sbr.rel (0) target = $region25
    $region24: #{tpu_custom_call.1} parent=1 // pred_region
      _
    $region25: #{tpu_custom_call.1} parent=1 // pred_fallthru
      _
    // Predicated region
    $region26: #{tpu_custom_call.1} parent=1 // pred_check
      _
    $region27: #{tpu_custom_call.1} parent=1 // pred_check_branch
      %29 = sbr.rel (0) target = $region29
    $region28: #{tpu_custom_call.1} parent=1 // pred_region
      _
    $region29: #{tpu_custom_call.1} parent=1 // pred_fallthru
      _
    %v31 = vld [vmem:[%s0] sm:$0xff]
    %v32 = vld [vmem:[%s1] sm:$0xff]
    %v33 = vpack.c.bf16 %v31, %v31
    %v34 = vld [vmem:[%s2] sm:$0xf]
    %v35 = vld [vmem:[%s2 + $0x4] sm:$0xf]
    %v36 = vld [vmem:[%s2 + $0x8] sm:$0xf]
    %v37 = vld [vmem:[%s2 + $0xc] sm:$0xf]
    %v38 = vld [vmem:[%s3] sm:$0x1]
    %v40 = vperm.slane %v38, 0
    %v46 = vunpack.c.l.b16 %v34
    %v47 = vunpack.c.l.b16 %v35
    %v48 = vunpack.c.l.b16 %v36
    %v49 = vunpack.c.l.b16 %v37
    %v50 = vpack.c.b16 %v47, %v46
    %v51 = vpack.c.b16 %v49, %v48
    %vm54 = vcmask 261120
    %v56 = vsel %vm54, %v33, 0
    %58 = vmatpush.bf16.msra.mxu0 0
    %59 = vmatpush.bf16.msra.mxu0 0
    %60 = vmatpush.bf16.msra.mxu0 0
    %61 = vmatpush.bf16.msra.mxu0 0
    %62 = vmatpush.bf16.msra.mxu0 0
    %63 = vmatpush.bf16.msra.mxu0 0
    %64 = vmatpush.bf16.msra.mxu0 %v51
    %65 = vmatpush.bf16.msra.mxu0 %v50
    %66 = vmatmul.bf16.gmra.mxu0 %v56
    %v67 = vpop.f32.mrf.mxu0
    %v68 = vadd.f32 %v40, %v67
    %v69 = vpop.f32.mrf.mxu0
    %70 = vdwg.mxu0
    %v71 = vmax.f32 %v68, 0.0
    %v72 = vpack.c.bf16 %v71, %v71
    %v73 = vld [vmem:[%s4] sm:$0xf]
    %v74 = vld [vmem:[%s4 + $0x4] sm:$0xf]
    %v75 = vld [vmem:[%s4 + $0x8] sm:$0xf]
    %v76 = vld [vmem:[%s4 + $0xc] sm:$0xf]
    %v77 = vld [vmem:[%s4 + $0x10] sm:$0xf]
    %v78 = vld [vmem:[%s4 + $0x14] sm:$0xf]
    %v79 = vld [vmem:[%s4 + $0x18] sm:$0xf]
    %v80 = vld [vmem:[%s4 + $0x1c] sm:$0xf]
    %v81 = vld [vmem:[%s5] sm:$0x1]
    %v83 = vperm.slane %v81, 0
    %v93 = vunpack.c.l.b16 %v73
    %v94 = vunpack.c.l.b16 %v74
    %v95 = vunpack.c.l.b16 %v75
    %v96 = vunpack.c.l.b16 %v76
    %v97 = vunpack.c.l.b16 %v77
    %v98 = vunpack.c.l.b16 %v78
    %v99 = vunpack.c.l.b16 %v79
    %v100 = vunpack.c.l.b16 %v80
    %v101 = vpack.c.b16 %v94, %v93
    %v102 = vpack.c.b16 %v96, %v95
    %v103 = vpack.c.b16 %v98, %v97
    %v104 = vpack.c.b16 %v100, %v99
    %vm109 = vcmask 523264
    %v111 = vsel %vm109, %v72, 0
    %113 = vmatpush.bf16.msra.mxu0 0
    %114 = vmatpush.bf16.msra.mxu0 0
    %115 = vmatpush.bf16.msra.mxu0 0
    %116 = vmatpush.bf16.msra.mxu0 0
    %117 = vmatpush.bf16.msra.mxu0 %v104
    %118 = vmatpush.bf16.msra.mxu0 %v103
    %119 = vmatpush.bf16.msra.mxu0 %v102
    %120 = vmatpush.bf16.msra.mxu0 %v101
    %121 = vmatmul.bf16.gmra.mxu0 %v111
    %v122 = vpop.f32.mrf.mxu0
    %v123 = vadd.f32 %v83, %v122
    %v124 = vpop.f32.mrf.mxu0
    %125 = vdwg.mxu0
    %v126 = vld [vmem:[%s6] sm:$0xf]
    %v127 = vld [vmem:[%s6 + $0x4] sm:$0xf]
    %v128 = vld [vmem:[%s6 + $0x8] sm:$0xf]
    %v129 = vld [vmem:[%s6 + $0xc] sm:$0xf]
    %v130 = vld [vmem:[%s6 + $0x10] sm:$0xf]
    %v131 = vld [vmem:[%s6 + $0x14] sm:$0xf]
    %v132 = vld [vmem:[%s6 + $0x18] sm:$0xf]
    %v133 = vld [vmem:[%s6 + $0x1c] sm:$0xf]
    %v142 = vunpack.c.l.b16 %v126
    %v143 = vunpack.c.l.b16 %v127
    %v144 = vunpack.c.l.b16 %v128
    %v145 = vunpack.c.l.b16 %v129
    %v146 = vunpack.c.l.b16 %v130
    %v147 = vunpack.c.l.b16 %v131
    %v148 = vunpack.c.l.b16 %v132
    %v149 = vunpack.c.l.b16 %v133
    %v150 = vpack.c.b16 %v143, %v142
    %v151 = vpack.c.b16 %v145, %v144
    %v152 = vpack.c.b16 %v147, %v146
    %v153 = vpack.c.b16 %v149, %v148
    %158 = vmatpush.bf16.msra.mxu0 0
    %159 = vmatpush.bf16.msra.mxu0 0
    %160 = vmatpush.bf16.msra.mxu0 0
    %161 = vmatpush.bf16.msra.mxu0 0
    %162 = vmatpush.bf16.msra.mxu0 %v153
    %163 = vmatpush.bf16.msra.mxu0 %v152
    %164 = vmatpush.bf16.msra.mxu0 %v151
    %165 = vmatpush.bf16.msra.mxu0 %v150
    %166 = vmatmul.bf16.gmra.mxu0 %v111
    %v167 = vpop.f32.mrf.mxu0
    %v168 = vadd.f32 0.0, %v167
    %v169 = vpop.f32.mrf.mxu0
    %170 = vdwg.mxu0
    %v171 = vxor.u32 %v123, 2147483648
    %v172 = vmul.f32 %v171, 1.442695
    %v173 = vpow.pop %v172
    %v174 = vadd.f32 %v173, 1.0
    %v175 = vrcp.pop %v174
    %v176 = vmul.f32 %v174, %v175
    %v177 = vsub.f32 1.0, %v176
    %v178 = vmul.f32 %v175, %v177
    %v179 = vadd.f32 %v175, %v178
    %vm180 = vweird.f32 %v174
    %vm181 = vweird.f32 %v175
    %vm182 = vmor %vm180, %vm181
    %v183 = vsel %vm182, %v175, %v179
    %v184 = vand.u32 2147483647, %v174
    %vm185 = vcmp.eq.f32.partialorder %v184, 8.507059e+37
    %v186 = vand.u32 %v174, 2147483648
    %v187 = vor.u32 1.1754944e-38, %v186
    %v188 = vsel %vm185, %v187, %v183
    %v189 = vmul.f32 1.0, %v188
    %vm190 = vcmask 130048
    %191 = vst.msk [vmem:[#allocation2] sm:$0xff] %vm190, %v189
    %v192 = vmax.f32 %v123, 0.0
    %v193 = vmul.f32 %v123, %v32
    %v194 = vsub.f32 %v192, %v193
    %v195 = vand.u32 2147483647, %v123
    %v196 = vsub.f32 0.0, %v195
    %v197 = vmul.f32 %v196, 1.442695
    %v198 = vpow.pop %v197
    %v199 = vadd.f32 %v198, 1.0
    %v200 = vlog2.pop %v199
    %v201 = vmul.f32 %v200, 0.6931472
    %v202 = vmul.f32 -0.5, %v198
    %v203 = vadd.f32 %v202, 1.0
    %v204 = vmul.f32 %v203, %v198
    %v205 = vand.u32 2147483647, %v198
    %vm206 = vcmp.lt.f32.partialorder %v205, 0.0004427343
    %v207 = vsel %vm206, %v204, %v201
    %v208 = vadd.f32 %v194, %v207
    %v209 = vsel %vm190, %v208, 0.0
    %210 = vadd.xlane.f32.xlu0 %v209
    %v211 = vpop.xlane.xlu0 %210
    %v212 = vrot.slane %v211, 4
    %v213 = vadd.f32 %v211, %v212
    %v214 = vrot.slane %v213, 2
    %v215 = vadd.f32 %v213, %v214
    %v216 = vrot.slane %v215, 1
    %v217 = vadd.f32 %v215, %v216
    %s218 = vtos %v217
    %v219 = vstv %s218
    %v220 = vrcp.pop 128.0
    %v221 = vmul.f32 128.0, %v220
    %v222 = vsub.f32 1.0, %v221
    %v223 = vmul.f32 %v220, %v222
    %v224 = vadd.f32 %v220, %v223
    %vm225 = vweird.f32 %v220
    %v226 = vsel %vm225, %v220, %v224
    %v227 = vmul.f32 %v219, %v226
    %v228 = vsub.f32 %v189, %v32
    %v229 = vmul.f32 %v168, %v228
    %v230 = vsel %vm190, %v229, 0.0
    %231 = vadd.xlane.f32.xlu0 %v230
    %v232 = vpop.xlane.xlu0 %231
    %vm233 = vcmask 7168
    %v234 = vsel %vm233, %v232, 0.0
    %235 = vadd.xlane.f32.xlu0 %v234
    %v236 = vpop.xlane.xlu0 %235
    %v237 = vrot.slane %v236, 4
    %v238 = vadd.f32 %v236, %v237
    %v239 = vrot.slane %v238, 2
    %v240 = vadd.f32 %v238, %v239
    %v241 = vrot.slane %v240, 1
    %v242 = vadd.f32 %v240, %v241
    %s243 = vtos %v242
    %v244 = vstv %s243
    %v245 = vrcp.pop 8.0
    %v246 = vmul.f32 8.0, %v245
    %v247 = vsub.f32 1.0, %v246
    %v248 = vmul.f32 %v245, %v247
    %v249 = vadd.f32 %v245, %v248
    %vm250 = vweird.f32 %v245
    %v251 = vsel %vm250, %v245, %v249
    %v252 = vmul.f32 %v244, %v251
    %v253 = vlaneseq
    %v254 = vand.u32 %v253, 127
    %vm255 = vcmp.eq.s32.totalorder %v254, 0
    %vm256 = vcmp.eq.s32.totalorder %v254, 1
    %v257 = vsel %vm256, %v227, 0.0
    %v258 = vsel %vm255, %v252, %v257
    %259 = vst [vmem:[#allocation4] sm:$0x1] %v258
    // Predicated region
    $region30: #{tpu_custom_call.1} parent=1 // pred_check
      _
    $region31: #{tpu_custom_call.1} parent=1 // pred_check_branch
      %261 = sbr.rel (0) target = $region33
    $region32: #{tpu_custom_call.1} parent=1 // pred_region
      %263 = vsyncadd [#allocation3], 0
      %s265 = sshll.u32 [#allocation2], 4
      %s266 = int_to_ptr.vmem [resolvable:$true] %s265
      %s267 = sshll.u32 %s7, 4
      %s268 = int_to_ptr.hbm [resolvable:$true] %s267
      %270 = dma.vmem_to_hbm [thread:$0]  %s266, 128, %s268, [#allocation3]
    $region33: #{tpu_custom_call.1} parent=1 // pred_fallthru
      _
    // Predicated region
    $region34: #{tpu_custom_call.1} parent=1 // pred_check
      _
    $region35: #{tpu_custom_call.1} parent=1 // pred_check_branch
      %272 = sbr.rel (0) target = $region37
    $region36: #{tpu_custom_call.1} parent=1 // pred_region
      %274 = vsyncadd [#allocation5], 0
      %s276 = sshll.u32 [#allocation4], 4
      %s277 = int_to_ptr.vmem [resolvable:$true] %s276
      %s278 = sshll.u32 %s8, 4
      %s279 = int_to_ptr.hbm [resolvable:$true] %s278
      %281 = dma.vmem_to_hbm [thread:$0]  %s277, 16, %s279, [#allocation5]
    $region37: #{tpu_custom_call.1} parent=1 // pred_fallthru
      _
    // Predicated region
    $region38: #{tpu_custom_call.1} parent=1 // pred_check
      _
    $region39: #{tpu_custom_call.1} parent=1 // pred_check_branch
      %283 = sbr.rel (0) target = $region41
    $region40: #{tpu_custom_call.1} parent=1 // pred_region
      %285 = dma.done [#allocation3], 128
    $region41: #{tpu_custom_call.1} parent=1 // pred_fallthru
      _
    // Predicated region
    $region42: #{tpu_custom_call.1} parent=1 // pred_check
      _
    $region43: #{tpu_custom_call.1} parent=1 // pred_check_branch
      %287 = sbr.rel (0) target = $region45
    $region44: #{tpu_custom_call.1} parent=1 // pred_region
      %289 = dma.done [#allocation5], 16
    $region45: #{tpu_custom_call.1} parent=1 // pred_fallthru
      _
    %290 = vsyncpa [#allocation3], 1
    %291 = vsyncpa [#allocation5], 1

</llo_original>
